<compile_context>
chip_gen: v7x
topology: tpu7x:2x2x1
jax: 0.10.0
libtpu: 0.0.40
codegen_flags: <defaults>
</compile_context>

<pallas_src>
import jax
import jax.numpy as jnp
from jax import lax
from jax.experimental import pallas as pl
from jax.experimental.pallas import tpu as pltpu


def _round_up(x, m):
    return ((x + m - 1) // m) * m


def _attn_kernel(q_ref, key_ref, v_ref, *rest):
    """softmax(q @ key_scaled^T) -> (optional dropout) -> weighted sum with v.

    Per grid step:
      q_ref    : (TILE, D)  bf16/f32   row tile of q
      key_ref  : (C, D)     bf16/f32   key with 1/sqrt(C) pre-folded (contract on D)
      v_ref    : (1, C)     f32        fc(value) matvec, precomputed in the wrapper
      mask_ref : (TILE, C)  optional   dropout keep-mask already scaled by 1/(1-p)
      o_ref    : (TILE, 1)  f32
    """
    if len(rest) == 2:
        mask_ref, o_ref = rest
    else:
        mask_ref, (o_ref,) = None, rest

    # qk = q @ key^T on the MXU: contract D of both operands (no transpose copy).
    qk = lax.dot_general(q_ref[...], key_ref[...],
                         dimension_numbers=(((1,), (1,)), ((), ())),
                         preferred_element_type=jnp.float32)        # (TILE, C) f32

    # Numerically stable softmax fused with the rank-1 "@ v" reduction:
    #   out_i = sum_j softmax(qk)_ij * mask_ij * v_j
    #         = (sum_j e_ij * mask_ij * v_j) * reciprocal(sum_j e_ij)
    m = jnp.max(qk, axis=-1, keepdims=True)
    e = jnp.exp(qk - m)
    denom = jnp.sum(e, axis=-1, keepdims=True)
    weighted = e * v_ref[...]                       # broadcast (1, C) over rows
    if mask_ref is not None:
        weighted = weighted * mask_ref[...].astype(jnp.float32)
    num = jnp.sum(weighted, axis=-1, keepdims=True)
    o_ref[...] = (num * pl.reciprocal(denom, approx=True)).astype(o_ref.dtype)


def model_forward(q, key_w, value_w, fc_w, *, dropout_p=0.0, seed=0,
                  use_bf16=True, row_tile=None):
    """Pallas equivalent of Model.forward(q, contents); `contents` is unused by
    the PyTorch forward, so it is omitted here."""
    N, D = q.shape
    C, D2 = key_w.shape
    assert D == D2, "q last dim must equal query_emb_dim"
    C_out, C_in = fc_w.shape
    assert C_in == C and C_out == C, \
        "dropout_qk.matmul(v) requires out_emb_dim == content_emb_dim"

    dropout_p = float(dropout_p)
    # PyTorch dropout with p >= 1 zeroes everything (module default p = 1):
    # short-circuit in the wrapper -> no kernel launch, no HBM traffic.
    if dropout_p >= 1.0:
        return jnp.zeros((N,), jnp.float32)

    scale = float(C) ** (-0.5)
    in_dtype = jnp.bfloat16 if use_bf16 else jnp.float32
    itemsize = jnp.dtype(in_dtype).itemsize

    # Hoist the q-independent fc matvec: the (C, C) fc weight never enters VMEM.
    v = (fc_w.astype(jnp.float32) @ value_w.astype(jnp.float32)).reshape(1, C)
    # Fold 1/sqrt(C) into the key cast (fused into the cast's single read/write).
    qx = q.astype(in_dtype)
    kx = (key_w.astype(jnp.float32) * scale).astype(in_dtype)        # (C, D)

    # Byte-sized row tiling: target ~2 MiB of q per tile; >=2 tiles for megacore.
    if row_tile is not None:
        tile = max(8, _round_up(int(row_tile), 8))
    else:
        tile = (2 << 20) // max(D * itemsize, 1)
        tile = min(max(_round_up(tile, 128), 512), 4096)
        if N > 1024 and 2 * tile > N:          # keep both v7x TensorCores busy
            tile = _round_up((N + 1) // 2, 128)
    if tile >= N:
        tile = _round_up(N, 8)
    n_pad = _round_up(N, tile)
    grid = (n_pad // tile,)

    if n_pad != N:
        qx = jnp.pad(qx, ((0, n_pad - N), (0, 0)))

    use_mask = dropout_p > 0.0
    inputs = [qx, kx, v]
    in_specs = [
        pl.BlockSpec((tile, D), lambda i: (i, 0)),   # q row tile
        pl.BlockSpec((C, D),    lambda i: (0, 0)),   # key (constant index map)
        pl.BlockSpec((1, C),    lambda i: (0, 0)),   # v   (constant index map)
    ]
    if use_mask:
        # TODO(synk): RNG stream differs from torch's dropout (distribution-equivalent only).
        keep = jax.random.bernoulli(jax.random.PRNGKey(seed),
                                    1.0 - dropout_p, (n_pad, C))
        mask = (keep.astype(jnp.float32) * (1.0 / (1.0 - dropout_p))).astype(in_dtype)
        inputs.append(mask)
        in_specs.append(pl.BlockSpec((tile, C), lambda i: (i, 0)))

    # Scoped-VMEM budget: double-buffered inputs/outputs + f32 intermediates,
    # 2x headroom, capped generation-aware (~40% of physical VMEM when known).
    vmem_bytes = (2 * tile * D * itemsize + 2 * C * D * itemsize + 2 * C * 4
                  + 2 * tile * 4 + 6 * tile * C * 4)
    if use_mask:
        vmem_bytes += 2 * tile * C * itemsize
    try:
        cap = int(pltpu.get_tpu_info().vmem_capacity_bytes) * 2 // 5
    except Exception:  # not on a real TPU (e.g. interpret mode) -> safe default
        cap = 32 << 20
    vmem_limit = int(min(max(2 * vmem_bytes, 8 << 20), max(cap, 8 << 20)))

    out = pl.pallas_call(
        _attn_kernel,
        out_shape=jax.ShapeDtypeStruct((n_pad, 1), jnp.float32),
        grid=grid,
        in_specs=in_specs,
        out_specs=pl.BlockSpec((tile, 1), lambda i: (i, 0)),
        compiler_params=pltpu.CompilerParams(
            dimension_semantics=("parallel",),
            vmem_limit_bytes=vmem_limit,
        ),
    )(*inputs)

    return out.reshape(n_pad)[:N]


if __name__ == "__main__":
    # Small shapes consistent with the module: q: (N, query_emb_dim),
    # key: (content_emb_dim, query_emb_dim), value: (content_emb_dim,),
    # fc.weight: (out_emb_dim, content_emb_dim) with out_emb_dim == content_emb_dim.
    N, query_emb_dim, content_emb_dim = 8, 16, 8
    out_emb_dim = content_emb_dim

    k0, k1, k2, k3, k4 = jax.random.split(jax.random.PRNGKey(0), 5)
    q       = jax.random.normal(k0, (N, query_emb_dim), dtype=jnp.float32)
    key_w   = jax.random.normal(k1, (content_emb_dim, query_emb_dim), dtype=jnp.float32)
    value_w = jax.random.normal(k2, (content_emb_dim,), dtype=jnp.float32)
    fc_w    = jax.random.normal(k3, (out_emb_dim, content_emb_dim), dtype=jnp.float32)
    contents = jax.random.normal(k4, (N, content_emb_dim), dtype=jnp.float32)  # unused by forward

    # 1) p = 0: deterministic; reference mirrors the kernel's bf16 operand rounding
    #    (scale folded into the key before the bf16 cast).
    out = jax.block_until_ready(
        model_forward(q, key_w, value_w, fc_w, dropout_p=0.0, seed=0))
    scale = content_emb_dim ** (-0.5)
    qf = q.astype(jnp.bfloat16).astype(jnp.float32)
    kf = (key_w * scale).astype(jnp.bfloat16).astype(jnp.float32)
    ref = jax.nn.softmax(qf @ kf.T, axis=-1) @ (fc_w @ value_w)
    assert out.shape == (N,)
    assert jnp.allclose(out, ref, atol=2e-2, rtol=2e-2), (out, ref)

    # 2) p = 1 (the module's default dropout_p): exact zeros, no kernel launch.
    out1 = jax.block_until_ready(
        model_forward(q, key_w, value_w, fc_w, dropout_p=1.0, seed=0))
    assert out1.shape == (N,) and bool(jnp.all(out1 == 0.0))

    # 3) 0 < p < 1: exercises the dropout-mask path (shape / finiteness).
    outp = jax.block_until_ready(
        model_forward(q, key_w, value_w, fc_w, dropout_p=0.5, seed=123))
    assert outp.shape == (N,) and bool(jnp.all(jnp.isfinite(outp)))

    print("KERNEL_OK")
</pallas_src>

<mosaic_0001>
module attributes {stable_mosaic.version = 11 : i64} {
  func.func @_attn_kernel(%arg0: i32, %arg1: memref<8x16xbf16, #tpu.memory_space<vmem>>, %arg2: memref<8x16xbf16, #tpu.memory_space<vmem>>, %arg3: memref<1x8xf32, #tpu.memory_space<vmem>>, %arg4: memref<8x1xf32, #tpu.memory_space<vmem>>) attributes {dimension_semantics = [#tpu.dimension_semantics<parallel>], iteration_bounds = array<i64: 1>, scalar_prefetch = 0 : i64, scratch_operands = 0 : i64, tpu.core_type = #tpu.core_type<tc>, window_params = [{transform_indices = @transform_0, window_bounds = array<i64: 8, 16>}, {pipeline_mode = #tpu.pipeline_mode<synchronous>, transform_indices = @transform_1, window_bounds = array<i64: 8, 16>}, {pipeline_mode = #tpu.pipeline_mode<synchronous>, transform_indices = @transform_2, window_bounds = array<i64: 1, 8>}, {transform_indices = @transform_3, window_bounds = array<i64: 8, 1>}]} {
    %c0 = arith.constant 0 : index
    %c0_0 = arith.constant 0 : index
    %0 = vector.load %arg1[%c0, %c0_0] : memref<8x16xbf16, #tpu.memory_space<vmem>>, vector<8x16xbf16>
    %c0_1 = arith.constant 0 : index
    %c0_2 = arith.constant 0 : index
    %1 = vector.load %arg2[%c0_1, %c0_2] : memref<8x16xbf16, #tpu.memory_space<vmem>>, vector<8x16xbf16>
    %cst = arith.constant dense<0.000000e+00> : vector<8x8xf32>
    %2 = tpu.matmul %0, %1, %cst {dimension_numbers = #tpu.dot_dimension_numbers<[1], [1], [0], [0], [0, 0, 1, 0], [], []>} : vector<8x16xbf16>, vector<8x16xbf16>, vector<8x8xf32> -> vector<8x8xf32>
    %cst_3 = arith.constant dense<0xFF800000> : vector<8xf32>
    %3 = vector.multi_reduction <maximumf>, %2, %cst_3 [1] : vector<8x8xf32> to vector<8xf32>
    %4 = vector.shape_cast %3 : vector<8xf32> to vector<8x1xf32>
    %5 = vector.broadcast %4 : vector<8x1xf32> to vector<8x8xf32>
    %6 = arith.subf %2, %5 : vector<8x8xf32>
    %7 = math.exp %6 : vector<8x8xf32>
    %cst_4 = arith.constant dense<0.000000e+00> : vector<8xf32>
    %8 = vector.multi_reduction <add>, %7, %cst_4 [1] : vector<8x8xf32> to vector<8xf32>
    %9 = vector.shape_cast %8 : vector<8xf32> to vector<8x1xf32>
    %c0_5 = arith.constant 0 : index
    %c0_6 = arith.constant 0 : index
    %10 = vector.load %arg3[%c0_5, %c0_6] : memref<1x8xf32, #tpu.memory_space<vmem>>, vector<1x8xf32>
    %11 = vector.broadcast %10 : vector<1x8xf32> to vector<8x8xf32>
    %12 = arith.mulf %7, %11 : vector<8x8xf32>
    %cst_7 = arith.constant dense<0.000000e+00> : vector<8xf32>
    %13 = vector.multi_reduction <add>, %12, %cst_7 [1] : vector<8x8xf32> to vector<8xf32>
    %14 = vector.shape_cast %13 : vector<8xf32> to vector<8x1xf32>
    %15 = tpu.reciprocal %9 {approx = true} : vector<8x1xf32> -> vector<8x1xf32>
    %16 = arith.mulf %14, %15 : vector<8x1xf32>
    %c0_8 = arith.constant 0 : index
    %c0_9 = arith.constant 0 : index
    %17 = vector.load %arg4[%c0_8, %c0_9] : memref<8x1xf32, #tpu.memory_space<vmem>>, vector<8x1xf32>
    tpu.vector_store %arg4[%c0_8, %c0_9], %16 {strides = array<i32>} : memref<8x1xf32, #tpu.memory_space<vmem>>, vector<8x1xf32>,
    return
  }
  func.func @transform_0(%arg0: i32) -> (i32, i32) {
    %c0_i32 = arith.constant 0 : i32
    %c0_i32_0 = arith.constant 0 : i32
    return %arg0, %c0_i32 : i32, i32
  }
  func.func @transform_1(%arg0: i32) -> (i32, i32) {
    %c0_i32 = arith.constant 0 : i32
    %c0_i32_0 = arith.constant 0 : i32
    %c0_i32_1 = arith.constant 0 : i32
    return %c0_i32, %c0_i32_0 : i32, i32
  }
  func.func @transform_2(%arg0: i32) -> (i32, i32) {
    %c0_i32 = arith.constant 0 : i32
    %c0_i32_0 = arith.constant 0 : i32
    %c0_i32_1 = arith.constant 0 : i32
    return %c0_i32, %c0_i32_0 : i32, i32
  }
  func.func @transform_3(%arg0: i32) -> (i32, i32) {
    %c0_i32 = arith.constant 0 : i32
    %c0_i32_0 = arith.constant 0 : i32
    return %arg0, %c0_i32 : i32, i32
  }
}

</mosaic_0001>

<llo_original>
// kernel: tpu_custom_call.1
$region0: #{tpu_custom_call.1}
  #allocation0 [shape = 'u32[]', space=smem, size = 0x4, offset = 0x4, fixed_abs, tag = 'smem constant byte address 0x4 - core index']
  #allocation1 [shape = 'u32[144,128]{1,0:T(1,128)}', space=vmem, size = 0x12000, scoped, tag = 'internal scratch']
  %s0 = inlined_call_operand.hbm [shape: bf16[8,16], index: 0, kind: input, shape index: {}]
  %s1 = inlined_call_operand.hbm [shape: bf16[8,16], index: 1, kind: input, shape index: {}]
  %s2 = inlined_call_operand.vmem [shape: f32[1,8], index: 2, kind: input, shape index: {}]
  %s3 = inlined_call_operand.vmem [shape: f32[8,1], index: 3, kind: output, shape index: {}]
  %s4 = sld [smem:[#allocation0]]
  $region30: #{tpu_custom_call.1} parent=0
    _
  %s6 = ssub.s32 1, %s4
  %s7 = scalar_select 0, %s6, %s4
  $region1: #{tpu_custom_call.1} parent=0
    #allocation2 [shape = 'u8[2048]{0}', space=vmem, size = 0x800, scoped, tag = 'input window, operand 0, single buffered']
    #allocation3 [shape = 's32[1]{0}', space=sflag, size = 0x4, scoped, tag = 'scoped memory for tpu_custom_call.1']
    #allocation4 [shape = 'u8[2048]{0}', space=vmem, size = 0x800, scoped, tag = 'input window, operand 1, single buffered']
    #allocation5 [shape = 's32[1]{0}', space=sflag, size = 0x4, scoped, tag = 'scoped memory for tpu_custom_call.1']
    %8 = vsyncpa [#allocation3], 0
    %9 = vsyncpa [#allocation5], 0
    // Predicated region
    $region2: #{tpu_custom_call.1} parent=1 // pred_check
      _
    $region3: #{tpu_custom_call.1} parent=1 // pred_check_branch
      %11 = sbr.rel (0) target = $region5
    $region4: #{tpu_custom_call.1} parent=1 // pred_region
      %s13 = ssub.s32 64, 64
      %14 = vsyncadd [#allocation3], %s13
      %s16 = sshll.u32 [#allocation2], 4
      %s17 = int_to_ptr.vmem [resolvable:$true] %s16
      %19 = dma.hbm_to_vmem [thread:$0]  %s0, 64, %s17, [#allocation3]
    $region5: #{tpu_custom_call.1} parent=1 // pred_fallthru
      _
    // Predicated region
    $region6: #{tpu_custom_call.1} parent=1 // pred_check
      _
    $region7: #{tpu_custom_call.1} parent=1 // pred_check_branch
      %21 = sbr.rel (0) target = $region9
    $region8: #{tpu_custom_call.1} parent=1 // pred_region
      %s23 = ssub.s32 64, 64
      %24 = vsyncadd [#allocation5], %s23
      %s26 = sshll.u32 [#allocation4], 4
      %s27 = int_to_ptr.vmem [resolvable:$true] %s26
      %29 = dma.hbm_to_vmem [thread:$0]  %s1, 64, %s27, [#allocation5]
    $region9: #{tpu_custom_call.1} parent=1 // pred_fallthru
      _
    // Predicated region
    $region10: #{tpu_custom_call.1} parent=1 // pred_check
      _
    $region11: #{tpu_custom_call.1} parent=1 // pred_check_branch
      %31 = sbr.rel (0) target = $region13
    $region12: #{tpu_custom_call.1} parent=1 // pred_region
      _
    $region13: #{tpu_custom_call.1} parent=1 // pred_fallthru
      _
    // Predicated region
    $region14: #{tpu_custom_call.1} parent=1 // pred_check
      _
    $region15: #{tpu_custom_call.1} parent=1 // pred_check_branch
      %33 = sbr.rel (0) target = $region17
    $region16: #{tpu_custom_call.1} parent=1 // pred_region
      %34 = dma.done [#allocation3], 64
    $region17: #{tpu_custom_call.1} parent=1 // pred_fallthru
      _
    // Predicated region
    $region18: #{tpu_custom_call.1} parent=1 // pred_check
      _
    $region19: #{tpu_custom_call.1} parent=1 // pred_check_branch
      %36 = sbr.rel (0) target = $region21
    $region20: #{tpu_custom_call.1} parent=1 // pred_region
      %37 = dma.done [#allocation5], 64
    $region21: #{tpu_custom_call.1} parent=1 // pred_fallthru
      _
    %v39 = vld [vmem:[#allocation2] sm:$0xf]
    %v40 = vld [vmem:[#allocation4] sm:$0xf]
    %vm41 = vcmask 130048
    %v43 = vsel %vm41, %v39, 0
    %v46 = vsel %vm41, %v40, 0
    %48 = vmatprep.subr.bf16.mxu0 0
    %49 = vmatpush1.bf16.xpose.msra.mxu0 %v46
    %50 = vmatprep.subr.bf16.mxu0 0
    %51 = vmatpush1.bf16.xpose.msra.mxu0 0
    %52 = vmatprep.subr.bf16.mxu0 0
    %53 = vmatpush1.bf16.xpose.msra.mxu0 0
    %54 = vmatprep.subr.bf16.mxu0 0
    %55 = vmatpush1.bf16.xpose.msra.mxu0 0
    %56 = vmatprep.subr.bf16.mxu0 0
    %57 = vmatpush1.bf16.xpose.msra.mxu0 0
    %58 = vmatprep.subr.bf16.mxu0 0
    %59 = vmatpush1.bf16.xpose.msra.mxu0 0
    %60 = vmatprep.subr.bf16.mxu0 0
    %61 = vmatpush1.bf16.xpose.msra.mxu0 0
    %62 = vmatprep.subr.bf16.mxu0 0
    %63 = vmatpush1.bf16.xpose.msra.mxu0 0
    %64 = vmatprep.subr.bf16.mxu0 0
    %65 = vmatpush1.bf16.xpose.msra.mxu0 0
    %66 = vmatprep.subr.bf16.mxu0 0
    %67 = vmatpush1.bf16.xpose.msra.mxu0 0
    %68 = vmatprep.subr.bf16.mxu0 0
    %69 = vmatpush1.bf16.xpose.msra.mxu0 0
    %70 = vmatprep.subr.bf16.mxu0 0
    %71 = vmatpush1.bf16.xpose.msra.mxu0 0
    %72 = vmatprep.subr.bf16.mxu0 0
    %73 = vmatpush1.bf16.xpose.msra.mxu0 0
    %74 = vmatprep.subr.bf16.mxu0 0
    %75 = vmatpush1.bf16.xpose.msra.mxu0 0
    %76 = vmatprep.subr.bf16.mxu0 0
    %77 = vmatpush1.bf16.xpose.msra.mxu0 0
    %78 = vmatprep.subr.bf16.mxu0 0
    %79 = vmatpush1.bf16.xpose.msra.mxu0 0
    %80 = vmatprep.mubr.bf16.mxu0 0
    %81 = vmatmul.mubr.bf16.gmra.mrb[0].mxu0 %v43
    %v82 = vpop.f32.mrb[0].mxu0
    %v83 = vadd.f32 0.0, %v82
    %v84 = vpop.f32.mrb[0].mxu0
    %v85 = vpop.f32.mrb[0].mxu0
    %v86 = vpop.f32.mrb[0].mxu0
    %87 = vdwg.mxu0
    %vm88 = vcmask 64512
    %v89 = vsel %vm88, %v83, -inf
    %90 = vmax.xlane.f32.xlu0 %v89
    %v91 = vpop.xlane.xlu0 %90
    %v92 = vsub.f32 %v83, %v91
    %v93 = vmul.f32 %v92, 1.442695
    %v94 = vpow.pop %v93
    %v95 = vsel %vm88, %v94, 0.0
    %96 = vadd.xlane.f32.xlu0 %v95
    %v97 = vpop.xlane.xlu0 %96
    %v98 = vld [vmem:[%s2] sm:$0x1]
    %v100 = vlaneseq
    %v101 = vshrl.u32 %v100, 7
    %v102 = vsub.s32 0, %v101
    %v103 = vrot.slane %v98, %v102
    %v105 = vmul.f32 %v94, %v103
    %v106 = vsel %vm88, %v105, 0.0
    %107 = vadd.xlane.f32.xlu0 %v106
    %v108 = vpop.xlane.xlu0 %107
    %v109 = vrcp.pop %v97
    %v110 = vmul.f32 %v108, %v109
    %vm111 = vcmask 7168
    %112 = vst.msk [vmem:[%s3] sm:$0xff] %vm111, %v110
    // Predicated region
    $region22: #{tpu_custom_call.1} parent=1 // pred_check
      _
    $region23: #{tpu_custom_call.1} parent=1 // pred_check_branch
      %114 = sbr.rel (0) target = $region25
    $region24: #{tpu_custom_call.1} parent=1 // pred_region
      _
    $region25: #{tpu_custom_call.1} parent=1 // pred_fallthru
      _
    // Predicated region
    $region26: #{tpu_custom_call.1} parent=1 // pred_check
      _
    $region27: #{tpu_custom_call.1} parent=1 // pred_check_branch
      %116 = sbr.rel (0) target = $region29
    $region28: #{tpu_custom_call.1} parent=1 // pred_region
      _
    $region29: #{tpu_custom_call.1} parent=1 // pred_fallthru
      _
    %117 = vsyncpa [#allocation3], 1
    %118 = vsyncpa [#allocation5], 1

</llo_original>
